<compile_context>
chip_gen: v6e
topology: v6e:2x2x1
jax: 0.10.0
libtpu: 0.0.40
codegen_flags: <defaults>
</compile_context>

<pallas_src>
import functools

import jax
import jax.numpy as jnp
from jax.experimental import pallas as pl
from jax.experimental.pallas import tpu as pltpu

# ---- model hyperparameters (small, consistent with the module) ----
B = 2                 # batch
N = 8                 # sequence length
C = 32                # dim
MLP_RATIO = 4.0
HIDDEN = int(C * MLP_RATIO)   # 128
SKIP_LAM = 1.0
LN_EPS = 1e-5
BN = B * N

_SQRT_HALF = 0.7071067811865476


def _erf_poly(x):
    """erf(x) via Abramowitz & Stegun 7.1.26 (max abs error ~1.5e-7).

    Uses only exp / mul / add / divide, which all lower cleanly on the TPU
    VPU / EUP (lax.erf itself is not guaranteed to have a Mosaic lowering).
    """
    ax = jnp.abs(x)
    t = 1.0 / (1.0 + 0.3275911 * ax)
    poly = t * (0.254829592 +
                t * (-0.284496736 +
                     t * (1.421413741 +
                          t * (-1.453152027 +
                               t * 1.061405429))))
    e = 1.0 - poly * jnp.exp(-(ax * ax))
    return jnp.where(x >= 0, e, -e)


def _gelu_exact(x):
    """Exact (erf-based) GELU, matching torch.nn.GELU() default."""
    return 0.5 * x * (1.0 + _erf_poly(x * _SQRT_HALF))


def ffn_block_kernel(x_ref, pc_ref, w1t_ref, b1_ref, w2t_ref, o_ref):
    """Whole (B*N, C) slab in one invocation.

    x_ref   : (BN, C)       flattened input
    pc_ref  : (3, C)        rows = [ln gamma, ln beta, fc2 bias]
    w1t_ref : (C, HIDDEN)   fc1 weight, pre-transposed (PyTorch weight.T)
    b1_ref  : (1, HIDDEN)   fc1 bias
    w2t_ref : (HIDDEN, C)   fc2 weight, pre-transposed
    o_ref   : (BN, C)       output slab
    """
    x = x_ref[...]                                 # (BN, C)
    pc = pc_ref[...]                               # (3, C)
    gamma = pc[0:1, :]                             # (1, C)
    beta = pc[1:2, :]                              # (1, C)
    b2 = pc[2:3, :]                                # (1, C)

    # skip_lam == 1.0 -> emit no extra mul (trace-time guard).
    xs = x * SKIP_LAM if SKIP_LAM != 1.0 else x

    # ---- LayerNorm over channels (biased variance, eps=1e-5), single-pass var ----
    mean = jnp.mean(xs, axis=-1, keepdims=True)
    mean_sq = jnp.mean(xs * xs, axis=-1, keepdims=True)
    var = mean_sq - mean * mean
    ln = (xs - mean) * jax.lax.rsqrt(var + LN_EPS)
    ln = ln * gamma + beta                         # (BN, C)

    # ---- fc1 + exact GELU ----
    h = jnp.dot(ln, w1t_ref[...],
                preferred_element_type=jnp.float32) + b1_ref[...]   # (BN, HIDDEN)
    h = _gelu_exact(h)

    # ---- fc2 ----
    y = jnp.dot(h, w2t_ref[...],
                preferred_element_type=jnp.float32) + b2            # (BN, C)

    if SKIP_LAM != 1.0:
        y = y * (1.0 / SKIP_LAM)

    # ---- residual: one dense store of the full slab ----
    o_ref[...] = x + y


@functools.partial(jax.jit)
def ffn_block(x, gamma, beta, w1, b1, w2, b2):
    """x: (B, N, C) f32.  w1: (HIDDEN, C), w2: (C, HIDDEN) -- PyTorch layouts."""
    Bx, Nx, Cx = x.shape
    bn = Bx * Nx
    x2 = x.reshape(bn, Cx)
    params_c = jnp.stack([gamma, beta, b2], axis=0)    # (3, C)
    w1t = w1.T                                         # (C, HIDDEN)
    w2t = w2.T                                         # (HIDDEN, C)
    b1r = b1.reshape(1, HIDDEN)

    out2 = pl.pallas_call(
        ffn_block_kernel,
        out_shape=jax.ShapeDtypeStruct((bn, Cx), jnp.float32),
        grid=(1,),
        in_specs=[
            pl.BlockSpec((bn, Cx), lambda i: (0, 0)),          # x (flattened)
            pl.BlockSpec((3, Cx), lambda i: (0, 0)),           # [gamma, beta, b2]
            pl.BlockSpec((Cx, HIDDEN), lambda i: (0, 0)),      # W1^T
            pl.BlockSpec((1, HIDDEN), lambda i: (0, 0)),       # b1
            pl.BlockSpec((HIDDEN, Cx), lambda i: (0, 0)),      # W2^T
        ],
        out_specs=pl.BlockSpec((bn, Cx), lambda i: (0, 0)),
        compiler_params=pltpu.CompilerParams(
            dimension_semantics=("arbitrary",)),
    )(x2, params_c, w1t, b1r, w2t)

    return out2.reshape(Bx, Nx, Cx)


def ffn_block_ref(x, gamma, beta, w1, b1, w2, b2):
    """Pure-JAX reference mirroring the PyTorch FFNBlock.forward."""
    xs = x * SKIP_LAM
    mean = jnp.mean(xs, axis=-1, keepdims=True)
    var = jnp.mean((xs - mean) ** 2, axis=-1, keepdims=True)
    ln = (xs - mean) / jnp.sqrt(var + LN_EPS) * gamma + beta
    h = ln @ w1.T + b1
    h = jax.nn.gelu(h, approximate=False)          # exact erf GELU == nn.GELU()
    y = h @ w2.T + b2
    return x + y / SKIP_LAM


if __name__ == "__main__":
    key = jax.random.PRNGKey(0)
    k_x, k_g, k_b, k_w1, k_b1, k_w2, k_b2 = jax.random.split(key, 7)

    x = jax.random.normal(k_x, (B, N, C), dtype=jnp.float32)
    # Deterministic synthetic parameters (shapes per the module's __init__):
    gamma = 1.0 + 0.1 * jax.random.normal(k_g, (C,), dtype=jnp.float32)     # norm2.weight
    beta = 0.1 * jax.random.normal(k_b, (C,), dtype=jnp.float32)            # norm2.bias
    w1 = 0.05 * jax.random.normal(k_w1, (HIDDEN, C), dtype=jnp.float32)     # mlp.fc1.weight
    b1 = 0.05 * jax.random.normal(k_b1, (HIDDEN,), dtype=jnp.float32)       # mlp.fc1.bias
    w2 = 0.05 * jax.random.normal(k_w2, (C, HIDDEN), dtype=jnp.float32)     # mlp.fc2.weight
    b2 = 0.05 * jax.random.normal(k_b2, (C,), dtype=jnp.float32)            # mlp.fc2.bias

    out = ffn_block(x, gamma, beta, w1, b1, w2, b2)
    out = jax.block_until_ready(out)

    ref = ffn_block_ref(x, gamma, beta, w1, b1, w2, b2)
    assert out.shape == (B, N, C)
    assert jnp.allclose(out, ref, atol=1e-4, rtol=1e-4), "mismatch vs reference"

    print("KERNEL_OK")
</pallas_src>

<mosaic_0001>
module attributes {stable_mosaic.version = 11 : i64} {
  func.func @ffn_block_kernel(%arg0: i32, %arg1: memref<16x32xf32, #tpu.memory_space<vmem>>, %arg2: memref<3x32xf32, #tpu.memory_space<vmem>>, %arg3: memref<32x128xf32, #tpu.memory_space<vmem>>, %arg4: memref<1x128xf32, #tpu.memory_space<vmem>>, %arg5: memref<128x32xf32, #tpu.memory_space<vmem>>, %arg6: memref<16x32xf32, #tpu.memory_space<vmem>>) attributes {dimension_semantics = [#tpu.dimension_semantics<arbitrary>], iteration_bounds = array<i64: 1>, scalar_prefetch = 0 : i64, scratch_operands = 0 : i64, tpu.core_type = #tpu.core_type<tc>, window_params = [{pipeline_mode = #tpu.pipeline_mode<synchronous>, transform_indices = @transform_0, window_bounds = array<i64: 16, 32>}, {pipeline_mode = #tpu.pipeline_mode<synchronous>, transform_indices = @transform_1, window_bounds = array<i64: 3, 32>}, {pipeline_mode = #tpu.pipeline_mode<synchronous>, transform_indices = @transform_2, window_bounds = array<i64: 32, 128>}, {pipeline_mode = #tpu.pipeline_mode<synchronous>, transform_indices = @transform_3, window_bounds = array<i64: 1, 128>}, {pipeline_mode = #tpu.pipeline_mode<synchronous>, transform_indices = @transform_4, window_bounds = array<i64: 128, 32>}, {pipeline_mode = #tpu.pipeline_mode<synchronous>, transform_indices = @transform_5, window_bounds = array<i64: 16, 32>}]} {
    %c0 = arith.constant 0 : index
    %c0_0 = arith.constant 0 : index
    %0 = vector.load %arg1[%c0, %c0_0] : memref<16x32xf32, #tpu.memory_space<vmem>>, vector<16x32xf32>
    %c0_1 = arith.constant 0 : index
    %c0_2 = arith.constant 0 : index
    %1 = vector.load %arg2[%c0_1, %c0_2] : memref<3x32xf32, #tpu.memory_space<vmem>>, vector<3x32xf32>
    %2 = vector.extract_strided_slice %1 {offsets = [0, 0], sizes = [1, 32], strides = [1, 1]} : vector<3x32xf32> to vector<1x32xf32>
    %3 = vector.extract_strided_slice %1 {offsets = [1, 0], sizes = [1, 32], strides = [1, 1]} : vector<3x32xf32> to vector<1x32xf32>
    %4 = vector.extract_strided_slice %1 {offsets = [2, 0], sizes = [1, 32], strides = [1, 1]} : vector<3x32xf32> to vector<1x32xf32>
    %cst = arith.constant dense<0.000000e+00> : vector<16xf32>
    %5 = vector.multi_reduction <add>, %0, %cst [1] : vector<16x32xf32> to vector<16xf32>
    %6 = vector.shape_cast %5 : vector<16xf32> to vector<16x1xf32>
    %cst_3 = arith.constant 3.200000e+01 : f32
    %7 = vector.broadcast %cst_3 : f32 to vector<16x1xf32>
    %8 = arith.divf %6, %7 : vector<16x1xf32>
    %9 = arith.mulf %0, %0 : vector<16x32xf32>
    %cst_4 = arith.constant dense<0.000000e+00> : vector<16xf32>
    %10 = vector.multi_reduction <add>, %9, %cst_4 [1] : vector<16x32xf32> to vector<16xf32>
    %11 = vector.shape_cast %10 : vector<16xf32> to vector<16x1xf32>
    %cst_5 = arith.constant 3.200000e+01 : f32
    %12 = vector.broadcast %cst_5 : f32 to vector<16x1xf32>
    %13 = arith.divf %11, %12 : vector<16x1xf32>
    %14 = arith.mulf %8, %8 : vector<16x1xf32>
    %15 = arith.subf %13, %14 : vector<16x1xf32>
    %16 = vector.broadcast %8 : vector<16x1xf32> to vector<16x32xf32>
    %17 = arith.subf %0, %16 : vector<16x32xf32>
    %cst_6 = arith.constant 9.99999974E-6 : f32
    %18 = vector.broadcast %cst_6 : f32 to vector<16x1xf32>
    %19 = arith.addf %15, %18 : vector<16x1xf32>
    %20 = math.rsqrt %19 : vector<16x1xf32>
    %21 = vector.broadcast %20 : vector<16x1xf32> to vector<16x32xf32>
    %22 = arith.mulf %17, %21 : vector<16x32xf32>
    %23 = vector.broadcast %2 : vector<1x32xf32> to vector<16x32xf32>
    %24 = arith.mulf %22, %23 : vector<16x32xf32>
    %25 = vector.broadcast %3 : vector<1x32xf32> to vector<16x32xf32>
    %26 = arith.addf %24, %25 : vector<16x32xf32>
    %c0_7 = arith.constant 0 : index
    %c0_8 = arith.constant 0 : index
    %27 = vector.load %arg3[%c0_7, %c0_8] : memref<32x128xf32, #tpu.memory_space<vmem>>, vector<32x128xf32>
    %cst_9 = arith.constant dense<0.000000e+00> : vector<16x128xf32>
    %28 = tpu.matmul %26, %27, %cst_9 {dimension_numbers = #tpu.dot_dimension_numbers<[1], [0], [0], [1], [0, 0, 1, 1], [], []>} : vector<16x32xf32>, vector<32x128xf32>, vector<16x128xf32> -> vector<16x128xf32>
    %c0_10 = arith.constant 0 : index
    %c0_11 = arith.constant 0 : index
    %29 = vector.load %arg4[%c0_10, %c0_11] : memref<1x128xf32, #tpu.memory_space<vmem>>, vector<1x128xf32>
    %30 = vector.broadcast %29 : vector<1x128xf32> to vector<16x128xf32>
    %31 = arith.addf %28, %30 : vector<16x128xf32>
    %cst_12 = arith.constant 5.000000e-01 : f32
    %32 = vector.broadcast %cst_12 : f32 to vector<16x128xf32>
    %33 = arith.mulf %32, %31 : vector<16x128xf32>
    %cst_13 = arith.constant 0.707106769 : f32
    %34 = vector.broadcast %cst_13 : f32 to vector<16x128xf32>
    %35 = arith.mulf %31, %34 : vector<16x128xf32>
    %36 = math.absf %35 : vector<16x128xf32>
    %cst_14 = arith.constant 0.327591091 : f32
    %37 = vector.broadcast %cst_14 : f32 to vector<16x128xf32>
    %38 = arith.mulf %37, %36 : vector<16x128xf32>
    %cst_15 = arith.constant 1.000000e+00 : f32
    %39 = vector.broadcast %cst_15 : f32 to vector<16x128xf32>
    %40 = arith.addf %39, %38 : vector<16x128xf32>
    %cst_16 = arith.constant 1.000000e+00 : f32
    %41 = vector.broadcast %cst_16 : f32 to vector<16x128xf32>
    %42 = arith.divf %41, %40 : vector<16x128xf32>
    %cst_17 = arith.constant 1.06140542 : f32
    %43 = vector.broadcast %cst_17 : f32 to vector<16x128xf32>
    %44 = arith.mulf %42, %43 : vector<16x128xf32>
    %cst_18 = arith.constant -1.45315206 : f32
    %45 = vector.broadcast %cst_18 : f32 to vector<16x128xf32>
    %46 = arith.addf %45, %44 : vector<16x128xf32>
    %47 = arith.mulf %42, %46 : vector<16x128xf32>
    %cst_19 = arith.constant 1.42141378 : f32
    %48 = vector.broadcast %cst_19 : f32 to vector<16x128xf32>
    %49 = arith.addf %48, %47 : vector<16x128xf32>
    %50 = arith.mulf %42, %49 : vector<16x128xf32>
    %cst_20 = arith.constant -0.284496725 : f32
    %51 = vector.broadcast %cst_20 : f32 to vector<16x128xf32>
    %52 = arith.addf %51, %50 : vector<16x128xf32>
    %53 = arith.mulf %42, %52 : vector<16x128xf32>
    %cst_21 = arith.constant 0.254829586 : f32
    %54 = vector.broadcast %cst_21 : f32 to vector<16x128xf32>
    %55 = arith.addf %54, %53 : vector<16x128xf32>
    %56 = arith.mulf %42, %55 : vector<16x128xf32>
    %57 = arith.mulf %36, %36 : vector<16x128xf32>
    %cst_22 = arith.constant 0.000000e+00 : f32
    %58 = vector.broadcast %cst_22 : f32 to vector<16x128xf32>
    %59 = arith.subf %58, %57 : vector<16x128xf32>
    %60 = math.exp %59 : vector<16x128xf32>
    %61 = arith.mulf %56, %60 : vector<16x128xf32>
    %cst_23 = arith.constant 1.000000e+00 : f32
    %62 = vector.broadcast %cst_23 : f32 to vector<16x128xf32>
    %63 = arith.subf %62, %61 : vector<16x128xf32>
    %cst_24 = arith.constant 0.000000e+00 : f32
    %64 = vector.broadcast %cst_24 : f32 to vector<16x128xf32>
    %65 = arith.cmpf oge, %35, %64 : vector<16x128xf32>
    %cst_25 = arith.constant 0.000000e+00 : f32
    %66 = vector.broadcast %cst_25 : f32 to vector<16x128xf32>
    %67 = arith.subf %66, %63 : vector<16x128xf32>
    %68 = arith.select %65, %63, %67 : vector<16x128xi1>, vector<16x128xf32>
    %cst_26 = arith.constant 1.000000e+00 : f32
    %69 = vector.broadcast %cst_26 : f32 to vector<16x128xf32>
    %70 = arith.addf %69, %68 : vector<16x128xf32>
    %71 = arith.mulf %33, %70 : vector<16x128xf32>
    %c0_27 = arith.constant 0 : index
    %c0_28 = arith.constant 0 : index
    %72 = vector.load %arg5[%c0_27, %c0_28] : memref<128x32xf32, #tpu.memory_space<vmem>>, vector<128x32xf32>
    %cst_29 = arith.constant dense<0.000000e+00> : vector<16x32xf32>
    %73 = tpu.matmul %71, %72, %cst_29 {dimension_numbers = #tpu.dot_dimension_numbers<[1], [0], [0], [1], [0, 0, 1, 1], [], []>} : vector<16x128xf32>, vector<128x32xf32>, vector<16x32xf32> -> vector<16x32xf32>
    %74 = vector.broadcast %4 : vector<1x32xf32> to vector<16x32xf32>
    %75 = arith.addf %73, %74 : vector<16x32xf32>
    %76 = arith.addf %0, %75 : vector<16x32xf32>
    %c0_30 = arith.constant 0 : index
    %c0_31 = arith.constant 0 : index
    %77 = vector.load %arg6[%c0_30, %c0_31] : memref<16x32xf32, #tpu.memory_space<vmem>>, vector<16x32xf32>
    tpu.vector_store %arg6[%c0_30, %c0_31], %76 {strides = array<i32>} : memref<16x32xf32, #tpu.memory_space<vmem>>, vector<16x32xf32>,
    return
  }
  func.func @transform_0(%arg0: i32) -> (i32, i32) {
    %c0_i32 = arith.constant 0 : i32
    %c0_i32_0 = arith.constant 0 : i32
    %c0_i32_1 = arith.constant 0 : i32
    return %c0_i32, %c0_i32_0 : i32, i32
  }
  func.func @transform_1(%arg0: i32) -> (i32, i32) {
    %c0_i32 = arith.constant 0 : i32
    %c0_i32_0 = arith.constant 0 : i32
    %c0_i32_1 = arith.constant 0 : i32
    return %c0_i32, %c0_i32_0 : i32, i32
  }
  func.func @transform_2(%arg0: i32) -> (i32, i32) {
    %c0_i32 = arith.constant 0 : i32
    %c0_i32_0 = arith.constant 0 : i32
    %c0_i32_1 = arith.constant 0 : i32
    return %c0_i32, %c0_i32_0 : i32, i32
  }
  func.func @transform_3(%arg0: i32) -> (i32, i32) {
    %c0_i32 = arith.constant 0 : i32
    %c0_i32_0 = arith.constant 0 : i32
    %c0_i32_1 = arith.constant 0 : i32
    return %c0_i32, %c0_i32_0 : i32, i32
  }
  func.func @transform_4(%arg0: i32) -> (i32, i32) {
    %c0_i32 = arith.constant 0 : i32
    %c0_i32_0 = arith.constant 0 : i32
    %c0_i32_1 = arith.constant 0 : i32
    return %c0_i32, %c0_i32_0 : i32, i32
  }
  func.func @transform_5(%arg0: i32) -> (i32, i32) {
    %c0_i32 = arith.constant 0 : i32
    %c0_i32_0 = arith.constant 0 : i32
    %c0_i32_1 = arith.constant 0 : i32
    return %c0_i32, %c0_i32_0 : i32, i32
  }
}

</mosaic_0001>

<llo_original>
// kernel: ffn_block.1
$region0: #{ffn_block.1}
  #allocation0 [shape = 'u32[]', space=smem, size = 0x4, offset = 0x4, fixed_abs, tag = 'smem constant byte address 0x4 - core index']
  #allocation1 [shape = 'u32[144,128]{1,0:T(1,128)}', space=vmem, size = 0x12000, scoped, tag = 'internal scratch']
  %s0 = inlined_call_operand.vmem [shape: f32[16,32], index: 0, kind: input, shape index: {}]
  %s1 = inlined_call_operand.vmem [shape: f32[3,32], index: 1, kind: input, shape index: {}]
  %s2 = inlined_call_operand.vmem [shape: f32[32,128], index: 2, kind: input, shape index: {}]
  %s3 = inlined_call_operand.vmem [shape: f32[1,128], index: 3, kind: input, shape index: {}]
  %s4 = inlined_call_operand.vmem [shape: f32[128,32], index: 4, kind: input, shape index: {}]
  %s5 = inlined_call_operand.hbm [shape: f32[16,32], index: 5, kind: output, shape index: {}]
  %s6 = sld [smem:[#allocation0]]
  $region30: #{ffn_block.1} parent=0
    _
  %s8 = ssub.s32 1, %s6
  %s9 = scalar_select 0, %s8, %s6
  $region1: #{ffn_block.1} parent=0
    #allocation2 [shape = 'u8[8192]{0}', space=vmem, size = 0x2000, scoped, tag = 'output window, operand 0, single buffered']
    #allocation3 [shape = 's32[1]{0}', space=sflag, size = 0x4, scoped, tag = 'scoped memory for ffn_block.1']
    %10 = vsyncpa [#allocation3], 0
    // Predicated region
    $region2: #{ffn_block.1} parent=1 // pred_check
      _
    $region3: #{ffn_block.1} parent=1 // pred_check_branch
      %12 = sbr.rel (0) target = $region5
    $region4: #{ffn_block.1} parent=1 // pred_region
      _
    $region5: #{ffn_block.1} parent=1 // pred_fallthru
      _
    // Predicated region
    $region6: #{ffn_block.1} parent=1 // pred_check
      _
    $region7: #{ffn_block.1} parent=1 // pred_check_branch
      %14 = sbr.rel (0) target = $region9
    $region8: #{ffn_block.1} parent=1 // pred_region
      _
    $region9: #{ffn_block.1} parent=1 // pred_fallthru
      _
    // Predicated region
    $region10: #{ffn_block.1} parent=1 // pred_check
      _
    $region11: #{ffn_block.1} parent=1 // pred_check_branch
      %16 = sbr.rel (0) target = $region13
    $region12: #{ffn_block.1} parent=1 // pred_region
      _
    $region13: #{ffn_block.1} parent=1 // pred_fallthru
      _
    // Predicated region
    $region14: #{ffn_block.1} parent=1 // pred_check
      _
    $region15: #{ffn_block.1} parent=1 // pred_check_branch
      %18 = sbr.rel (0) target = $region17
    $region16: #{ffn_block.1} parent=1 // pred_region
      _
    $region17: #{ffn_block.1} parent=1 // pred_fallthru
      _
    // Predicated region
    $region18: #{ffn_block.1} parent=1 // pred_check
      _
    $region19: #{ffn_block.1} parent=1 // pred_check_branch
      %20 = sbr.rel (0) target = $region21
    $region20: #{ffn_block.1} parent=1 // pred_region
      _
    $region21: #{ffn_block.1} parent=1 // pred_fallthru
      _
    %v21 = vld [vmem:[%s0] sm:$0xff]
    %v22 = vld [vmem:[%s0 + $0x8] sm:$0xff]
    %v23 = vld [vmem:[%s1] sm:$0x7]
    %vm24 = vcmask 261120
    %v25 = vsel %vm24, %v21, 0.0
    %26 = vadd.xlane.f32.xlu0 %v25
    %v27 = vpop.xlane.xlu0 %26
    %v28 = vsel %vm24, %v22, 0.0
    %29 = vadd.xlane.f32.xlu0 %v28
    %v30 = vpop.xlane.xlu0 %29
    %v31 = vrcp.pop 32.0
    %v32 = vmul.f32 %v27, %v31
    %v33 = vmul.f32 %v30, %v31
    %v34 = vmul.f32 %v21, %v21
    %v35 = vmul.f32 %v22, %v22
    %v36 = vsel %vm24, %v34, 0.0
    %37 = vadd.xlane.f32.xlu0 %v36
    %v38 = vpop.xlane.xlu0 %37
    %v39 = vsel %vm24, %v35, 0.0
    %40 = vadd.xlane.f32.xlu0 %v39
    %v41 = vpop.xlane.xlu0 %40
    %v42 = vmul.f32 %v38, %v31
    %v43 = vmul.f32 %v41, %v31
    %v44 = vmul.f32 %v32, %v32
    %v45 = vmul.f32 %v33, %v33
    %v46 = vsub.f32 %v42, %v44
    %v47 = vsub.f32 %v43, %v45
    %v48 = vsub.f32 %v21, %v32
    %v49 = vsub.f32 %v22, %v33
    %v50 = vadd.f32 %v46, 1e-05
    %v51 = vadd.f32 %v47, 1e-05
    %v52 = vrsqrt.pop %v50
    %v53 = vrsqrt.pop %v51
    %v54 = vmul.f32 %v48, %v52
    %v55 = vmul.f32 %v49, %v53
    %v56 = vlaneseq
    %v57 = vshrl.u32 %v56, 7
    %v58 = vsub.s32 0, %v57
    %v59 = vrot.slane %v23, %v58
    %v60 = vmul.f32 %v54, %v59
    %v61 = vmul.f32 %v55, %v59
    %v62 = vlaneseq
    %v63 = vshrl.u32 %v62, 7
    %v64 = vsub.s32 1, %v63
    %v65 = vrot.slane %v23, %v64
    %v66 = vadd.f32 %v60, %v65
    %v67 = vadd.f32 %v61, %v65
    %v68 = vld [vmem:[%s2] sm:$0xff]
    %v69 = vld [vmem:[%s2 + $0x8] sm:$0xff]
    %v70 = vld [vmem:[%s2 + $0x10] sm:$0xff]
    %v71 = vld [vmem:[%s2 + $0x18] sm:$0xff]
    %v72 = vld [vmem:[%s3] sm:$0x1]
    %v74 = vlaneseq
    %v75 = vshrl.u32 %v74, 7
    %v76 = vsub.s32 0, %v75
    %v77 = vrot.slane %v72, %v76
    %v80 = vsel %vm24, %v66, 0
    %v83 = vsel %vm24, %v67, 0
    %85 = vmatprep.subr.mxu0 0.0
    %86 = vmatpush1.msra.mxu0 0.0
    %87 = vmatprep.subr.mxu0 0.0
    %88 = vmatpush1.msra.mxu0 0.0
    %89 = vmatprep.subr.mxu0 0.0
    %90 = vmatpush1.msra.mxu0 0.0
    %91 = vmatprep.subr.mxu0 0.0
    %92 = vmatpush1.msra.mxu0 0.0
    %93 = vmatprep.subr.mxu0 0.0
    %94 = vmatpush1.msra.mxu0 0.0
    %95 = vmatprep.subr.mxu0 0.0
    %96 = vmatpush1.msra.mxu0 0.0
    %97 = vmatprep.subr.mxu0 0.0
    %98 = vmatpush1.msra.mxu0 0.0
    %99 = vmatprep.subr.mxu0 0.0
    %100 = vmatpush1.msra.mxu0 0.0
    %101 = vmatprep.subr.mxu0 0.0
    %102 = vmatpush1.msra.mxu0 0.0
    %103 = vmatprep.subr.mxu0 0.0
    %104 = vmatpush1.msra.mxu0 0.0
    %105 = vmatprep.subr.mxu0 0.0
    %106 = vmatpush1.msra.mxu0 0.0
    %107 = vmatprep.subr.mxu0 0.0
    %108 = vmatpush1.msra.mxu0 0.0
    %109 = vmatprep.subr.mxu0 0.0
    %110 = vmatpush1.msra.mxu0 %v71
    %111 = vmatprep.subr.mxu0 0.0
    %112 = vmatpush1.msra.mxu0 %v70
    %113 = vmatprep.subr.mxu0 0.0
    %114 = vmatpush1.msra.mxu0 %v69
    %115 = vmatprep.subr.mxu0 0.0
    %116 = vmatpush1.msra.mxu0 %v68
    %117 = vmatprep.subr.mxu0 0.0
    %118 = vmatpush2.msra.mxu0 0.0
    %119 = vmatprep.subr.mxu0 0.0
    %120 = vmatpush2.msra.mxu0 0.0
    %121 = vmatprep.subr.mxu0 0.0
    %122 = vmatpush2.msra.mxu0 0.0
    %123 = vmatprep.subr.mxu0 0.0
    %124 = vmatpush2.msra.mxu0 0.0
    %125 = vmatprep.subr.mxu0 0.0
    %126 = vmatpush2.msra.mxu0 0.0
    %127 = vmatprep.subr.mxu0 0.0
    %128 = vmatpush2.msra.mxu0 0.0
    %129 = vmatprep.subr.mxu0 0.0
    %130 = vmatpush2.msra.mxu0 0.0
    %131 = vmatprep.subr.mxu0 0.0
    %132 = vmatpush2.msra.mxu0 0.0
    %133 = vmatprep.subr.mxu0 0.0
    %134 = vmatpush2.msra.mxu0 0.0
    %135 = vmatprep.subr.mxu0 0.0
    %136 = vmatpush2.msra.mxu0 0.0
    %137 = vmatprep.subr.mxu0 0.0
    %138 = vmatpush2.msra.mxu0 0.0
    %139 = vmatprep.subr.mxu0 0.0
    %140 = vmatpush2.msra.mxu0 0.0
    %141 = vmatprep.subr.mxu0 0.0
    %142 = vmatpush2.msra.mxu0 0.0
    %143 = vmatprep.subr.mxu0 0.0
    %144 = vmatpush2.msra.mxu0 0.0
    %145 = vmatprep.subr.mxu0 0.0
    %146 = vmatpush2.msra.mxu0 0.0
    %147 = vmatprep.subr.mxu0 0.0
    %148 = vmatpush2.msra.mxu0 0.0
    %149 = vmatprep.mubr.f32.mxu0 0.0
    %150 = vmatmul.mubr.f32.gmra.mxu0 %v80
    %v151 = vpop.f32.mrf.mxu0
    %v152 = vadd.f32 %v77, %v151
    %v153 = vpop.f32.mrf.mxu0
    %154 = vmatprep.mubr.f32.mxu0 0.0
    %155 = vmatmul.mubr.f32.gmra.mxu0 %v83
    %v156 = vpop.f32.mrf.mxu0
    %v157 = vadd.f32 %v77, %v156
    %v158 = vpop.f32.mrf.mxu0
    %159 = vdwg.mxu0
    %v160 = vmul.f32 %v152, 0.5
    %v161 = vmul.f32 %v157, 0.5
    %v162 = vmul.f32 %v152, 0.70710677
    %v163 = vmul.f32 %v157, 0.70710677
    %v164 = vand.u32 2147483647, %v162
    %v165 = vand.u32 2147483647, %v163
    %v166 = vmul.f32 %v164, 0.3275911
    %v167 = vmul.f32 %v165, 0.3275911
    %v168 = vadd.f32 %v166, 1.0
    %v169 = vadd.f32 %v167, 1.0
    %v170 = vrcp.pop %v168
    %v171 = vmul.f32 1.0, %v170
    %v172 = vrcp.pop %v169
    %v173 = vmul.f32 1.0, %v172
    %v174 = vmul.f32 %v171, 1.0614054
    %v175 = vmul.f32 %v173, 1.0614054
    %v176 = vadd.f32 %v174, -1.4531521
    %v177 = vadd.f32 %v175, -1.4531521
    %v178 = vmul.f32 %v171, %v176
    %v179 = vmul.f32 %v173, %v177
    %v180 = vadd.f32 %v178, 1.4214138
    %v181 = vadd.f32 %v179, 1.4214138
    %v182 = vmul.f32 %v171, %v180
    %v183 = vmul.f32 %v173, %v181
    %v184 = vadd.f32 %v182, -0.28449672
    %v185 = vadd.f32 %v183, -0.28449672
    %v186 = vmul.f32 %v171, %v184
    %v187 = vmul.f32 %v173, %v185
    %v188 = vadd.f32 %v186, 0.2548296
    %v189 = vadd.f32 %v187, 0.2548296
    %v190 = vmul.f32 %v171, %v188
    %v191 = vmul.f32 %v173, %v189
    %v192 = vmul.f32 %v164, %v164
    %v193 = vmul.f32 %v165, %v165
    %v194 = vsub.f32 0.0, %v192
    %v195 = vsub.f32 0.0, %v193
    %v196 = vmul.f32 %v194, 1.442695
    %v197 = vpow.pop %v196
    %v198 = vmul.f32 %v195, 1.442695
    %v199 = vpow.pop %v198
    %v200 = vmul.f32 %v190, %v197
    %v201 = vmul.f32 %v191, %v199
    %v202 = vsub.f32 1.0, %v200
    %v203 = vsub.f32 1.0, %v201
    %vm204 = vcmp.ge.f32.partialorder %v162, 0.0
    %vm205 = vcmp.ge.f32.partialorder %v163, 0.0
    %v206 = vsub.f32 0.0, %v202
    %v207 = vsub.f32 0.0, %v203
    %v208 = vsel %vm204, %v202, %v206
    %v209 = vsel %vm205, %v203, %v207
    %v210 = vadd.f32 %v208, 1.0
    %v211 = vadd.f32 %v209, 1.0
    %v212 = vmul.f32 %v160, %v210
    %v213 = vmul.f32 %v161, %v211
    %v214 = vld [vmem:[%s4] sm:$0xff]
    %v215 = vld [vmem:[%s4 + $0x8] sm:$0xff]
    %v216 = vld [vmem:[%s4 + $0x10] sm:$0xff]
    %v217 = vld [vmem:[%s4 + $0x18] sm:$0xff]
    %v218 = vld [vmem:[%s4 + $0x20] sm:$0xff]
    %v219 = vld [vmem:[%s4 + $0x28] sm:$0xff]
    %v220 = vld [vmem:[%s4 + $0x30] sm:$0xff]
    %v221 = vld [vmem:[%s4 + $0x38] sm:$0xff]
    %v222 = vld [vmem:[%s4 + $0x40] sm:$0xff]
    %v223 = vld [vmem:[%s4 + $0x48] sm:$0xff]
    %v224 = vld [vmem:[%s4 + $0x50] sm:$0xff]
    %v225 = vld [vmem:[%s4 + $0x58] sm:$0xff]
    %v226 = vld [vmem:[%s4 + $0x60] sm:$0xff]
    %v227 = vld [vmem:[%s4 + $0x68] sm:$0xff]
    %v228 = vld [vmem:[%s4 + $0x70] sm:$0xff]
    %v229 = vld [vmem:[%s4 + $0x78] sm:$0xff]
    %v230 = vlaneseq
    %v231 = vshrl.u32 %v230, 7
    %v232 = vsub.s32 2, %v231
    %v233 = vrot.slane %v23, %v232
    %234 = vmatprep.subr.mxu0 0.0
    %235 = vmatpush1.msra.mxu0 %v229
    %236 = vmatprep.subr.mxu0 0.0
    %237 = vmatpush1.msra.mxu0 %v228
    %238 = vmatprep.subr.mxu0 0.0
    %239 = vmatpush1.msra.mxu0 %v227
    %240 = vmatprep.subr.mxu0 0.0
    %241 = vmatpush1.msra.mxu0 %v226
    %242 = vmatprep.subr.mxu0 0.0
    %243 = vmatpush1.msra.mxu0 %v225
    %244 = vmatprep.subr.mxu0 0.0
    %245 = vmatpush1.msra.mxu0 %v224
    %246 = vmatprep.subr.mxu0 0.0
    %247 = vmatpush1.msra.mxu0 %v223
    %248 = vmatprep.subr.mxu0 0.0
    %249 = vmatpush1.msra.mxu0 %v222
    %250 = vmatprep.subr.mxu0 0.0
    %251 = vmatpush1.msra.mxu0 %v221
    %252 = vmatprep.subr.mxu0 0.0
    %253 = vmatpush1.msra.mxu0 %v220
    %254 = vmatprep.subr.mxu0 0.0
    %255 = vmatpush1.msra.mxu0 %v219
    %256 = vmatprep.subr.mxu0 0.0
    %257 = vmatpush1.msra.mxu0 %v218
    %258 = vmatprep.subr.mxu0 0.0
    %259 = vmatpush1.msra.mxu0 %v217
    %260 = vmatprep.subr.mxu0 0.0
    %261 = vmatpush1.msra.mxu0 %v216
    %262 = vmatprep.subr.mxu0 0.0
    %263 = vmatpush1.msra.mxu0 %v215
    %264 = vmatprep.subr.mxu0 0.0
    %265 = vmatpush1.msra.mxu0 %v214
    %266 = vmatprep.subr.mxu0 0.0
    %267 = vmatpush2.msra.mxu0 0.0
    %268 = vmatprep.subr.mxu0 0.0
    %269 = vmatpush2.msra.mxu0 0.0
    %270 = vmatprep.subr.mxu0 0.0
    %271 = vmatpush2.msra.mxu0 0.0
    %272 = vmatprep.subr.mxu0 0.0
    %273 = vmatpush2.msra.mxu0 0.0
    %274 = vmatprep.subr.mxu0 0.0
    %275 = vmatpush2.msra.mxu0 0.0
    %276 = vmatprep.subr.mxu0 0.0
    %277 = vmatpush2.msra.mxu0 0.0
    %278 = vmatprep.subr.mxu0 0.0
    %279 = vmatpush2.msra.mxu0 0.0
    %280 = vmatprep.subr.mxu0 0.0
    %281 = vmatpush2.msra.mxu0 0.0
    %282 = vmatprep.subr.mxu0 0.0
    %283 = vmatpush2.msra.mxu0 0.0
    %284 = vmatprep.subr.mxu0 0.0
    %285 = vmatpush2.msra.mxu0 0.0
    %286 = vmatprep.subr.mxu0 0.0
    %287 = vmatpush2.msra.mxu0 0.0
    %288 = vmatprep.subr.mxu0 0.0
    %289 = vmatpush2.msra.mxu0 0.0
    %290 = vmatprep.subr.mxu0 0.0
    %291 = vmatpush2.msra.mxu0 0.0
    %292 = vmatprep.subr.mxu0 0.0
    %293 = vmatpush2.msra.mxu0 0.0
    %294 = vmatprep.subr.mxu0 0.0
    %295 = vmatpush2.msra.mxu0 0.0
    %296 = vmatprep.subr.mxu0 0.0
    %297 = vmatpush2.msra.mxu0 0.0
    %298 = vmatprep.mubr.f32.mxu0 0.0
    %299 = vmatmul.mubr.f32.gmra.mxu0 %v212
    %v300 = vpop.f32.mrf.mxu0
    %v301 = vadd.f32 %v233, %v300
    %v302 = vpop.f32.mrf.mxu0
    %303 = vmatprep.mubr.f32.mxu0 0.0
    %304 = vmatmul.mubr.f32.gmra.mxu0 %v213
    %v305 = vpop.f32.mrf.mxu0
    %v306 = vadd.f32 %v233, %v305
    %v307 = vpop.f32.mrf.mxu0
    %308 = vdwg.mxu0
    %v309 = vadd.f32 %v21, %v301
    %v310 = vadd.f32 %v22, %v306
    %311 = vst.msk [vmem:[#allocation2] sm:$0xff] %vm24, %v309
    %312 = vst.msk [vmem:[#allocation2 + $0x8] sm:$0xff] %vm24, %v310
    // Predicated region
    $region22: #{ffn_block.1} parent=1 // pred_check
      _
    $region23: #{ffn_block.1} parent=1 // pred_check_branch
      %314 = sbr.rel (0) target = $region25
    $region24: #{ffn_block.1} parent=1 // pred_region
      %s316 = ssub.s32 256, 256
      %317 = vsyncadd [#allocation3], %s316
      %s318 = sshll.u32 [#allocation2], 4
      %s319 = int_to_ptr.vmem [resolvable:$true] %s318
      %324 = dma.vmem_to_hbm [thread:$0]  %s319, 256, %s5, [#allocation3], 128, 128, 8
    $region25: #{ffn_block.1} parent=1 // pred_fallthru
      _
    // Predicated region
    $region26: #{ffn_block.1} parent=1 // pred_check
      _
    $region27: #{ffn_block.1} parent=1 // pred_check_branch
      %326 = sbr.rel (0) target = $region29
    $region28: #{ffn_block.1} parent=1 // pred_region
      %327 = dma.done [#allocation3], 256
    $region29: #{ffn_block.1} parent=1 // pred_fallthru
      _
    %328 = vsyncpa [#allocation3], 1

</llo_original>
